<compile_context>
chip_gen: v6e
topology: v6e:2x2x1
jax: 0.10.0
libtpu: 0.0.40
codegen_flags: <defaults>
</compile_context>

<pallas_src>
import functools

import jax
import jax.numpy as jnp
from jax.experimental import pallas as pl
from jax.experimental.pallas import tpu as pltpu


SMOOTHING = 0.1          # matches LabelSmoothingBCEWithLogitsLoss(smoothing=0.1)
LANES = 128
DEFAULT_BLOCK_ROWS = 8192   # 8192 x 128 x 4B = 4 MiB per f32 input tile
FAST_PATH_ELEMS = 32768     # below this, plain fused XLA is faster than a launch


def _cdiv(a, b):
    return -(-a // b)


def _detect_num_tensorcores():
    """Number of TensorCores a leading 'parallel' grid axis can shard across."""
    try:
        kind = jax.devices()[0].device_kind.lower()
    except Exception:
        return 1
    # v4 / v5p (megacore) and v7x expose 2 TensorCores per device; v5e / v6e
    # are single-TC so a size-2 'parallel' axis would only serialize (and can
    # force a phantom-block re-fetch when n_blocks is odd).
    # TODO(synk): verify on v7x that a leading "parallel" axis actually shards
    # across both TensorCores; if not, switch that axis to pltpu.CORE_PARALLEL.
    if any(tag in kind for tag in ("v7", "tpu7", "v4", "v5p")):
        return 2
    return 1


def _bce_ls_kernel(x_ref, t_ref, out_ref, acc_ref, *,
                   smoothing, tm, acc_rows, bpc, last_blk, n_valid,
                   has_ragged_tail, has_phantom):
    """Grid = (n_cores, blocks_per_core).

    Each step computes elementwise label-smoothed BCE-with-logits on a
    (tm, 128) tile and folds it onto a small VMEM accumulator.  Ragged-tail
    masking runs only for the single last real block; clamped phantom blocks
    (2-core split of an odd block count) skip compute + accumulate entirely.
    The per-core partial sum is written to SMEM once, in the last step.
    """
    c = pl.program_id(0)          # "parallel" core axis
    i = pl.program_id(1)          # "arbitrary" reduction axis

    @pl.when(i == 0)
    def _():
        acc_ref[...] = jnp.zeros_like(acc_ref)

    def tile_loss():
        x = x_ref[...].astype(jnp.float32)
        t = t_ref[...].astype(jnp.float32)
        # label smoothing: t' = t * (1 - s) + 0.5 * s
        t = t * (1.0 - smoothing) + 0.5 * smoothing
        # numerically-stable BCEWithLogits (same formula PyTorch uses):
        #   loss = max(x, 0) - x * t' + log(1 + exp(-|x|))
        return jnp.maximum(x, 0.0) - x * t + jnp.log1p(jnp.exp(-jnp.abs(x)))

    def fold(loss):
        # Pure VPU adds onto the vreg-shaped accumulator, hidden under the
        # HBM-bound DMA stream.
        acc_ref[...] += loss.reshape(-1, acc_rows, LANES).sum(axis=0)

    if not (has_ragged_tail or has_phantom):
        # Hot path: every block is full and real -> unconditional, unmasked.
        fold(tile_loss())
    else:
        blk = c * bpc + i

        if has_ragged_tail:
            # Full real blocks: unmasked accumulate (steady state).
            @pl.when(blk < last_blk)
            def _():
                fold(tile_loss())

            # The single ragged last block: mask lane pad, grid-tail rows and
            # any OOB garbage past the true element count.
            @pl.when(blk == last_blk)
            def _():
                loss = tile_loss()
                row0 = last_blk * tm
                rows = jax.lax.broadcasted_iota(jnp.int32, (tm, LANES), 0) + row0
                full_rows = n_valid // LANES
                rem = n_valid % LANES
                mask = rows < full_rows
                if rem:
                    cols = jax.lax.broadcasted_iota(jnp.int32, (tm, LANES), 1)
                    mask = mask | ((rows == full_rows) & (cols < rem))
                fold(jnp.where(mask, loss, 0.0))
        else:
            # Only clamped phantom blocks exist (no ragged tail): real blocks
            # accumulate unmasked, phantom blocks do nothing at all.
            @pl.when(blk <= last_blk)
            def _():
                fold(tile_loss())

    @pl.when(i == pl.num_programs(1) - 1)
    def _():
        # Single cross-lane/sublane reduction per core; partial SUM to SMEM.
        out_ref[0, 0] = jnp.sum(acc_ref[...])


def label_smoothing_bce_with_logits_loss(logits, targets, smoothing=SMOOTHING,
                                          *, block_rows=DEFAULT_BLOCK_ROWS,
                                          use_kernel=None, num_cores=None):
    """Mean-reduced label-smoothed BCEWithLogits loss (scalar, float32)."""
    assert logits.shape == targets.shape
    n = int(logits.size)

    if use_kernel is None:
        use_kernel = n >= FAST_PATH_ELEMS
    if not use_kernel:
        # Small-input fast path: fused XLA elementwise + reduce beats a launch.
        x = logits.astype(jnp.float32)
        t = targets.astype(jnp.float32) * (1.0 - smoothing) + 0.5 * smoothing
        loss = jnp.maximum(x, 0.0) - x * t + jnp.log1p(jnp.exp(-jnp.abs(x)))
        return jnp.mean(loss)

    # Flatten to a lane-dense (M, 128) slab in the NATIVE dtype (the kernel
    # casts to f32 on load, so bf16 inputs DMA half the bytes).
    flat_x = logits.reshape(-1)
    flat_t = targets.reshape(-1)
    pad = (-n) % LANES
    if pad:
        # Only needed when numel isn't lane-aligned; padded values are masked
        # out in-kernel, so the pad value is irrelevant.
        flat_x = jnp.pad(flat_x, (0, pad))
        flat_t = jnp.pad(flat_t, (0, pad))
    M = (n + pad) // LANES
    x2d = flat_x.reshape(M, LANES)
    t2d = flat_t.reshape(M, LANES)

    # Row-block size: full extent if it fits one block, else a large multiple
    # of 8 (2 inputs x 2 pipeline buffers sized to stay inside scoped VMEM on
    # every generation, including v7x's 64 MiB/TC).
    if M <= block_rows:
        tm = M
    else:
        assert block_rows % 8 == 0, "block_rows must be a multiple of 8"
        tm = block_rows

    n_blocks = _cdiv(M, tm)
    if num_cores is None:
        num_cores = _detect_num_tensorcores()
    n_cores = max(1, min(int(num_cores), n_blocks))
    bpc = _cdiv(n_blocks, n_cores)          # blocks per core
    acc_rows = 8 if tm % 8 == 0 else tm     # vreg-shaped accumulator when possible

    has_ragged_tail = (pad != 0) or (M % tm != 0)
    has_phantom = (n_cores * bpc != n_blocks)
    last_blk = n_blocks - 1

    if has_phantom:
        # Clamp phantom blocks of the last core to a valid block; the kernel
        # skips their compute + accumulate entirely.
        in_map = lambda c, i: (jnp.minimum(c * bpc + i, last_blk), 0)
    else:
        in_map = lambda c, i: (c * bpc + i, 0)

    kernel = functools.partial(
        _bce_ls_kernel,
        smoothing=float(smoothing), tm=tm, acc_rows=acc_rows, bpc=bpc,
        last_blk=last_blk, n_valid=n,
        has_ragged_tail=has_ragged_tail, has_phantom=has_phantom,
    )

    # VMEM budget: 2 inputs x 2 pipeline buffers of the chosen tile + headroom.
    itemsize = max(x2d.dtype.itemsize, t2d.dtype.itemsize)
    resident_bytes = 2 * 2 * tm * LANES * itemsize
    vmem_limit = min(max(32 * 1024 * 1024, resident_bytes + (4 << 20)),
                     64 * 1024 * 1024)

    partials = pl.pallas_call(
        kernel,
        out_shape=jax.ShapeDtypeStruct((n_cores, 1), jnp.float32),
        grid_spec=pltpu.PrefetchScalarGridSpec(
            num_scalar_prefetch=0,
            grid=(n_cores, bpc),
            in_specs=[
                pl.BlockSpec((tm, LANES), in_map),
                pl.BlockSpec((tm, LANES), in_map),
            ],
            out_specs=pl.BlockSpec((1, 1), lambda c, i: (c, 0),
                                   memory_space=pltpu.SMEM),
            scratch_shapes=[pltpu.VMEM((acc_rows, LANES), jnp.float32)],
        ),
        compiler_params=pltpu.CompilerParams(
            dimension_semantics=("parallel", "arbitrary"),
            vmem_limit_bytes=int(vmem_limit),
        ),
    )(x2d, t2d)

    # Sum per-core partial sums and divide once.
    return jnp.sum(partials) / jnp.float32(n)


def _reference_loss(logits, targets, smoothing=SMOOTHING):
    x = logits.astype(jnp.float32)
    t = targets.astype(jnp.float32) * (1.0 - smoothing) + 0.5 * smoothing
    loss = jnp.maximum(x, 0.0) - x * t + jnp.log1p(jnp.exp(-jnp.abs(x)))
    return jnp.mean(loss)


if __name__ == "__main__":
    key = jax.random.PRNGKey(0)
    k1, k2, k3, k4, k5, k6 = jax.random.split(key, 6)

    # 1) Small MIL-classifier-head shape (batch, num_classes), forced through
    #    the Pallas kernel (single full-extent block, mask-free hot path).
    b, nc = 8, 16
    logits1 = jax.random.normal(k1, (b, nc), dtype=jnp.float32)
    targets1 = jax.random.bernoulli(k2, 0.5, (b, nc)).astype(jnp.float32)
    loss1 = jax.block_until_ready(
        label_smoothing_bce_with_logits_loss(logits1, targets1, use_kernel=True))
    ref1 = _reference_loss(logits1, targets1)
    assert jnp.allclose(loss1, ref1, rtol=1e-5, atol=1e-6), (loss1, ref1)

    # 2) Ragged shape + tiny block_rows + forced 2-way core split: exercises
    #    the multi-block grid, the gated tail masking (last real block only)
    #    and the clamped phantom-block skip path.
    shape2 = (6, 7, 19, 23)   # 18354 elements, not a multiple of 128
    logits2 = jax.random.normal(k3, shape2, dtype=jnp.float32)
    targets2 = jax.random.bernoulli(k4, 0.3, shape2).astype(jnp.float32)
    loss2 = jax.block_until_ready(
        label_smoothing_bce_with_logits_loss(logits2, targets2,
                                             use_kernel=True, block_rows=16,
                                             num_cores=2))
    ref2 = _reference_loss(logits2, targets2)
    assert jnp.allclose(loss2, ref2, rtol=1e-5, atol=1e-6), (loss2, ref2)

    # 3) bf16 inputs on the auto kernel path: native-dtype DMA, f32 math inside.
    shape3 = (16, 2048)
    logits3 = jax.random.normal(k5, shape3, dtype=jnp.bfloat16)
    targets3 = jax.random.bernoulli(k6, 0.5, shape3).astype(jnp.bfloat16)
    loss3 = jax.block_until_ready(
        label_smoothing_bce_with_logits_loss(logits3, targets3))
    ref3 = _reference_loss(logits3, targets3)
    assert jnp.allclose(loss3, ref3, rtol=1e-4, atol=1e-5), (loss3, ref3)

    print("KERNEL_OK")
</pallas_src>

<mosaic_0001>
module attributes {stable_mosaic.version = 11 : i64} {
  func.func @_bce_ls_kernel(%arg0: i32, %arg1: i32, %arg2: memref<1x128xf32, #tpu.memory_space<vmem>>, %arg3: memref<1x128xf32, #tpu.memory_space<vmem>>, %arg4: memref<1x1xf32, #tpu.memory_space<smem>>, %arg5: memref<1x128xf32, #tpu.memory_space<vmem>>) attributes {dimension_semantics = [#tpu.dimension_semantics<parallel>, #tpu.dimension_semantics<arbitrary>], iteration_bounds = array<i64: 1, 1>, scalar_prefetch = 0 : i64, scratch_operands = 1 : i64, tpu.core_type = #tpu.core_type<tc>, window_params = [{transform_indices = @transform_0, window_bounds = array<i64: 1, 128>}, {transform_indices = @transform_1, window_bounds = array<i64: 1, 128>}, {transform_indices = @transform_2, window_bounds = array<i64: 1, 1>}]} {
    %c0_i32 = arith.constant 0 : i32
    %0 = arith.cmpi eq, %arg1, %c0_i32 : i32
    %1 = arith.extui %0 : i1 to i32
    %c0_i32_0 = arith.constant 0 : i32
    %2 = arith.cmpi ne, %1, %c0_i32_0 : i32
    scf.if %2 {
      %cst_14 = arith.constant 0.000000e+00 : f32
      %27 = vector.broadcast %cst_14 : f32 to vector<1x128xf32>
      %c0_15 = arith.constant 0 : index
      %c0_16 = arith.constant 0 : index
      %28 = vector.load %arg5[%c0_15, %c0_16] : memref<1x128xf32, #tpu.memory_space<vmem>>, vector<1x128xf32>
      tpu.vector_store %arg5[%c0_15, %c0_16], %27 {strides = array<i32>} : memref<1x128xf32, #tpu.memory_space<vmem>>, vector<1x128xf32>,
    } else {
    }
    %c0 = arith.constant 0 : index
    %c0_1 = arith.constant 0 : index
    %3 = vector.load %arg2[%c0, %c0_1] : memref<1x128xf32, #tpu.memory_space<vmem>>, vector<1x128xf32>
    %c0_2 = arith.constant 0 : index
    %c0_3 = arith.constant 0 : index
    %4 = vector.load %arg3[%c0_2, %c0_3] : memref<1x128xf32, #tpu.memory_space<vmem>>, vector<1x128xf32>
    %cst = arith.constant 0.899999976 : f32
    %5 = vector.broadcast %cst : f32 to vector<1x128xf32>
    %6 = arith.mulf %4, %5 : vector<1x128xf32>
    %cst_4 = arith.constant 5.000000e-02 : f32
    %7 = vector.broadcast %cst_4 : f32 to vector<1x128xf32>
    %8 = arith.addf %6, %7 : vector<1x128xf32>
    %cst_5 = arith.constant 0.000000e+00 : f32
    %9 = vector.broadcast %cst_5 : f32 to vector<1x128xf32>
    %10 = arith.maximumf %3, %9 : vector<1x128xf32>
    %11 = arith.mulf %3, %8 : vector<1x128xf32>
    %12 = arith.subf %10, %11 : vector<1x128xf32>
    %13 = math.absf %3 : vector<1x128xf32>
    %cst_6 = arith.constant 0.000000e+00 : f32
    %14 = vector.broadcast %cst_6 : f32 to vector<1x128xf32>
    %15 = arith.subf %14, %13 : vector<1x128xf32>
    %16 = math.exp %15 : vector<1x128xf32>
    %17 = math.log1p %16 : vector<1x128xf32>
    %18 = arith.addf %12, %17 : vector<1x128xf32>
    %c0_7 = arith.constant 0 : index
    %c0_8 = arith.constant 0 : index
    %19 = vector.load %arg5[%c0_7, %c0_8] : memref<1x128xf32, #tpu.memory_space<vmem>>, vector<1x128xf32>
    %20 = vector.shape_cast %18 : vector<1x128xf32> to vector<1x1x128xf32>
    %cst_9 = arith.constant dense<0.000000e+00> : vector<1x128xf32>
    %21 = vector.multi_reduction <add>, %20, %cst_9 [0] : vector<1x1x128xf32> to vector<1x128xf32>
    %22 = arith.addf %19, %21 : vector<1x128xf32>
    %c0_10 = arith.constant 0 : index
    %c0_11 = arith.constant 0 : index
    %23 = vector.load %arg5[%c0_10, %c0_11] : memref<1x128xf32, #tpu.memory_space<vmem>>, vector<1x128xf32>
    tpu.vector_store %arg5[%c0_10, %c0_11], %22 {strides = array<i32>} : memref<1x128xf32, #tpu.memory_space<vmem>>, vector<1x128xf32>,
    %c0_i32_12 = arith.constant 0 : i32
    %24 = arith.cmpi eq, %arg1, %c0_i32_12 : i32
    %25 = arith.extui %24 : i1 to i32
    %c0_i32_13 = arith.constant 0 : i32
    %26 = arith.cmpi ne, %25, %c0_i32_13 : i32
    scf.if %26 {
      %c0_14 = arith.constant 0 : index
      %c0_15 = arith.constant 0 : index
      %27 = vector.load %arg5[%c0_14, %c0_15] : memref<1x128xf32, #tpu.memory_space<vmem>>, vector<1x128xf32>
      %28 = vector.shape_cast %27 : vector<1x128xf32> to vector<1x1x128xf32>
      %cst_16 = arith.constant dense<0.000000e+00> : vector<1xf32>
      %29 = vector.multi_reduction <add>, %28, %cst_16 [1, 2] : vector<1x1x128xf32> to vector<1xf32>
      %30 = vector.shape_cast %29 : vector<1xf32> to vector<1x1x1xf32>
      %31 = vector.extract %30[0, 0, 0] : f32 from vector<1x1x1xf32>
      %c0_17 = arith.constant 0 : index
      %c0_18 = arith.constant 0 : index
      %32 = memref.load %arg4[%c0_17, %c0_18] : memref<1x1xf32, #tpu.memory_space<smem>>
      memref.store %31, %arg4[%c0_17, %c0_18] : memref<1x1xf32, #tpu.memory_space<smem>>
    } else {
    }
    return
  }
  func.func @transform_0(%arg0: i32, %arg1: i32) -> (i32, i32) {
    %c1_i32 = arith.constant 1 : i32
    %0 = arith.muli %arg0, %c1_i32 : i32
    %1 = arith.addi %0, %arg1 : i32
    %c0_i32 = arith.constant 0 : i32
    %c0_i32_0 = arith.constant 0 : i32
    return %1, %c0_i32 : i32, i32
  }
  func.func @transform_1(%arg0: i32, %arg1: i32) -> (i32, i32) {
    %c1_i32 = arith.constant 1 : i32
    %0 = arith.muli %arg0, %c1_i32 : i32
    %1 = arith.addi %0, %arg1 : i32
    %c0_i32 = arith.constant 0 : i32
    %c0_i32_0 = arith.constant 0 : i32
    return %1, %c0_i32 : i32, i32
  }
  func.func @transform_2(%arg0: i32, %arg1: i32) -> (i32, i32) {
    %c0_i32 = arith.constant 0 : i32
    %c0_i32_0 = arith.constant 0 : i32
    return %arg0, %c0_i32 : i32, i32
  }
}

</mosaic_0001>

<llo_original>
// kernel: tpu_custom_call.1
$region0: #{tpu_custom_call.1}
  #allocation0 [shape = 'u32[]', space=smem, size = 0x4, offset = 0x4, fixed_abs, tag = 'smem constant byte address 0x4 - core index']
  #allocation1 [shape = 'u32[144,128]{1,0:T(1,128)}', space=vmem, size = 0x12000, scoped, tag = 'internal scratch']
  #allocation2 [shape = 'f32[1,128]{1,0:T(1,128)}', space=vmem, size = 0x200, scoped, tag = 'scratch operand']
  %s0 = inlined_call_operand.hbm [shape: f32[1,128], index: 0, kind: input, shape index: {}]
  %s1 = inlined_call_operand.vmem [shape: f32[1,128], index: 1, kind: input, shape index: {}]
  %s2 = inlined_call_operand.hbm [shape: f32[1,1], index: 2, kind: output, shape index: {}]
  %s3 = sld [smem:[#allocation0]]
  $region30: #{tpu_custom_call.1} parent=0
    _
  %s5 = ssub.s32 1, %s3
  %s6 = scalar_select 0, %s5, %s3
  $region1: #{tpu_custom_call.1} parent=0
    #allocation3 [shape = 'u8[512]{0}', space=vmem, size = 0x400, scoped, tag = 'input window, operand 0, single buffered']
    #allocation4 [shape = 's32[1]{0}', space=sflag, size = 0x4, scoped, tag = 'scoped memory for tpu_custom_call.1']
    #allocation5 [shape = 's32[1]{0}', space=sflag, size = 0x4, scoped, tag = 'scoped memory for tpu_custom_call.1']
    #allocation6 [shape = 'u8[512]{0}', space=smem, size = 0x200, scoped, tag = 'output window, operand 0, single buffered']
    %7 = vsyncpa [#allocation4], 0
    %8 = vsyncpa [#allocation5], 0
    // Predicated region
    $region2: #{tpu_custom_call.1} parent=1 // pred_check
      _
    $region3: #{tpu_custom_call.1} parent=1 // pred_check_branch
      %10 = sbr.rel (0) target = $region5
    $region4: #{tpu_custom_call.1} parent=1 // pred_region
      %s11 = sadd.s32 0, 0
      %s13 = ssub.s32 16, 16
      %14 = vsyncadd [#allocation4], %s13
      %s15 = smul.addr %s11, 16
      %s16 = scalar_lea.hbm %s0, %s15
      %s18 = sshll.u32 [#allocation3], 4
      %s19 = int_to_ptr.vmem [resolvable:$true] %s18
      %21 = dma.hbm_to_vmem [thread:$0]  %s16, 16, %s19, [#allocation4]
    $region5: #{tpu_custom_call.1} parent=1 // pred_fallthru
      _
    // Predicated region
    $region6: #{tpu_custom_call.1} parent=1 // pred_check
      _
    $region7: #{tpu_custom_call.1} parent=1 // pred_check_branch
      %23 = sbr.rel (0) target = $region9
    $region8: #{tpu_custom_call.1} parent=1 // pred_region
      %s24 = sadd.s32 0, 0
      %p25 = scmp.lt.s32.totalorder %s24, 0
      %s26 = scalar_select %p25, %s24, 0
      %s27 = scalar_lea.vmem %s1, %s26
      %s28 = sadd.s32 0, 0
    $region9: #{tpu_custom_call.1} parent=1 // pred_fallthru
      _
    // Predicated region
    $region10: #{tpu_custom_call.1} parent=1 // pred_check
      _
    $region11: #{tpu_custom_call.1} parent=1 // pred_check_branch
      %30 = sbr.rel (0) target = $region13
    $region12: #{tpu_custom_call.1} parent=1 // pred_region
      %31 = dma.done [#allocation4], 16
    $region13: #{tpu_custom_call.1} parent=1 // pred_fallthru
      _
    %s32 = sadd.s32 0, 0
    %p33 = scmp.lt.s32.totalorder %s32, 0
    %s34 = scalar_select %p33, %s32, 0
    %s35 = scalar_lea.vmem %s1, %s34
    %s36 = sadd.s32 0, 0
    %s37 = sadd.s32 0, 0
    %p38 = scmp.lt.s32.totalorder %s37, 0
    %s39 = scalar_select %p38, %s37, 0
    %s40 = scalar_lea.vmem %s1, %s39
    %s41 = sadd.s32 0, 0
    %p42 = scmp.eq.s32.totalorder 0, 0
    // Predicated region
    $region14: #{tpu_custom_call.1} parent=1 // pred_check
      %p43 = pneg %p42
    $region15: #{tpu_custom_call.1} parent=1 // pred_check_branch
      %45 = sbr.rel (%p43) target = $region17
    $region16: #{tpu_custom_call.1} parent=1 // pred_region
      %46 = vst [vmem:[#allocation2] sm:$0x1] 0.0
    $region17: #{tpu_custom_call.1} parent=1 // pred_fallthru
      _
    %v47 = vld [vmem:[#allocation3] sm:$0x1]
    %v48 = vld [vmem:[%s40] sm:$0x1]
    %v49 = vmul.f32 %v48, 0.9
    %v50 = vadd.f32 %v49, 0.05
    %v51 = vmax.f32 %v47, 0.0
    %v52 = vmul.f32 %v47, %v50
    %v53 = vsub.f32 %v51, %v52
    %v54 = vand.u32 2147483647, %v47
    %v55 = vsub.f32 0.0, %v54
    %v56 = vmul.f32 %v55, 1.442695
    %v57 = vpow.pop %v56
    %v58 = vadd.f32 %v57, 1.0
    %v59 = vlog2.pop %v58
    %v60 = vmul.f32 %v59, 0.6931472
    %v61 = vmul.f32 -0.5, %v57
    %v62 = vadd.f32 %v61, 1.0
    %v63 = vmul.f32 %v62, %v57
    %v64 = vand.u32 2147483647, %v57
    %vm65 = vcmp.lt.f32.partialorder %v64, 0.0004427343
    %v66 = vsel %vm65, %v63, %v60
    %v67 = vadd.f32 %v53, %v66
    %v68 = vld [vmem:[#allocation2] sm:$0x1]
    %v69 = vadd.f32 %v67, 0.0
    %v70 = vadd.f32 %v68, %v69
    %71 = vst [vmem:[#allocation2] sm:$0x1] %v70
    // Predicated region
    $region18: #{tpu_custom_call.1} parent=1 // pred_check
      %p72 = pneg %p42
    $region19: #{tpu_custom_call.1} parent=1 // pred_check_branch
      %74 = sbr.rel (%p72) target = $region21
    $region20: #{tpu_custom_call.1} parent=1 // pred_region
      %v75 = vld [vmem:[#allocation2] sm:$0x1]
      %vm76 = vcmask 1040384
      %v77 = vsel %vm76, %v75, 0.0
      %78 = vadd.xlane.f32.xlu0 %v77
      %v79 = vpop.xlane.xlu0 %78
      %v80 = vrot.slane %v79, 4
      %v81 = vadd.f32 %v79, %v80
      %v82 = vrot.slane %v81, 2
      %v83 = vadd.f32 %v81, %v82
      %v84 = vrot.slane %v83, 1
      %v85 = vadd.f32 %v83, %v84
      %s86 = vtos %v85
      %s87 = scalar_lea.smem [#allocation6], 0
      %88 = sst [smem:[%s87]] %s86
    $region21: #{tpu_custom_call.1} parent=1 // pred_fallthru
      _
    // Predicated region
    $region22: #{tpu_custom_call.1} parent=1 // pred_check
      _
    $region23: #{tpu_custom_call.1} parent=1 // pred_check_branch
      %90 = sbr.rel (0) target = $region25
    $region24: #{tpu_custom_call.1} parent=1 // pred_region
      %s92 = ssub.s32 16, 16
      %93 = vsyncadd [#allocation5], %s92
      %96 = dma.smem_to_hbm [#allocation6], 16, %s2, [#allocation5]
    $region25: #{tpu_custom_call.1} parent=1 // pred_fallthru
      _
    // Predicated region
    $region26: #{tpu_custom_call.1} parent=1 // pred_check
      _
    $region27: #{tpu_custom_call.1} parent=1 // pred_check_branch
      %98 = sbr.rel (0) target = $region29
    $region28: #{tpu_custom_call.1} parent=1 // pred_region
      %99 = dma.done [#allocation5], 16
    $region29: #{tpu_custom_call.1} parent=1 // pred_fallthru
      _
    %100 = sfence
    %101 = vsyncpa [#allocation4], 1
    %102 = vsyncpa [#allocation5], 1

</llo_original>
